<compile_context>
chip_gen: v5e
topology: v5e:2x2
jax: 0.10.0
libtpu: 0.0.40
codegen_flags: <defaults>
</compile_context>

<pallas_src>
import jax
import jax.numpy as jnp
from jax.experimental import pallas as pl
from jax.experimental.pallas import tpu as pltpu

INPUT_SIZE = 200   # dataset='other' forces input_size = 200
OUT_SIZE = 2

HID_PAD = 256      # hidden width padded 200 -> 256 (lane-dense, clean MXU tiles)
N_PAD = 128        # final output dim padded 2 -> 128 (unmasked lane-dense stores)
_TM_CAP = 1024     # row-tile cap (sweep parameter); working set << 32 MiB VMEM


def dmn_kernel(x_ref, w1_ref, b1_ref, w2_ref, b2_ref, w3_ref, b3_ref, o_ref):
    # x arrives as f32 [TM, 200]; cast to bf16 in-kernel (VPU work hidden
    # under the MXU) instead of materializing a padded bf16 copy in HBM.
    x = x_ref[...].astype(jnp.bfloat16)

    # Layer 1: Linear + ReLU  (bf16 operands, f32 MXU accumulation, f32 bias).
    h1 = jnp.dot(x, w1_ref[...], preferred_element_type=jnp.float32)
    h1 = jnp.maximum(h1 + b1_ref[...], 0.0).astype(jnp.bfloat16)

    # Layer 2: Linear + ReLU.
    h2 = jnp.dot(h1, w2_ref[...], preferred_element_type=jnp.float32)
    h2 = jnp.maximum(h2 + b2_ref[...], 0.0).astype(jnp.bfloat16)

    # Layer 3: Linear (no activation). N padded to 128 keeps the store
    # lane-dense; bf16 output dtype halves the HBM writeback.
    out = jnp.dot(h2, w3_ref[...], preferred_element_type=jnp.float32)
    o_ref[...] = (out + b3_ref[...]).astype(o_ref.dtype)


def _pad_to(a, shape):
    return jnp.pad(a, [(0, t - s) for s, t in zip(a.shape, shape)])


def prepare_params(params):
    """One-time pad + bf16 cast of the constant weights (hoisted out of the
    per-call forward so inference never repeats this traffic/dispatch)."""
    w1, b1, w2, b2, w3, b3 = params
    return (
        _pad_to(w1, (INPUT_SIZE, HID_PAD)).astype(jnp.bfloat16),
        _pad_to(b1, (1, HID_PAD)).astype(jnp.float32),
        _pad_to(w2, (HID_PAD, HID_PAD)).astype(jnp.bfloat16),
        _pad_to(b2, (1, HID_PAD)).astype(jnp.float32),
        _pad_to(w3, (HID_PAD, N_PAD)).astype(jnp.bfloat16),
        _pad_to(b3, (1, N_PAD)).astype(jnp.float32),
    )


def _choose_tm(batch):
    """Row tile: big enough to amortize the ~0.35 us per-grid-step cost, small
    enough that double-buffered x/out tiles + f32 temporaries stay far below
    v7x's 64 MiB VMEM and v5e's (raised) scoped limit; for batches large
    enough to split we keep >= 2 grid steps so the 'parallel' axis shards
    across both v7x TensorCores."""
    if batch <= 512:
        return batch                       # single step; block == full row extent
    tm = min(_TM_CAP, -(-batch // 2))      # ceil(batch / 2), capped
    return -(-tm // 8) * 8                 # round up to a sublane multiple


@jax.jit
def distribution_matching_network(x, prepared_params):
    """x: [B, 200] f32  ->  [B, 2] f32 (the module's forward pass)."""
    w1, b1, w2, b2, w3, b3 = prepared_params
    B = x.shape[0]
    tm = _choose_tm(B)

    out = pl.pallas_call(
        dmn_kernel,
        out_shape=jax.ShapeDtypeStruct((B, N_PAD), jnp.bfloat16),
        grid=(pl.cdiv(B, tm),),
        in_specs=[
            # x stays unpadded f32 [B, 200]; last block dim == full array dim.
            pl.BlockSpec((tm, INPUT_SIZE), lambda i: (i, 0)),
            # Weights/biases: constant index_map -> DMA'd once, reused every
            # step.  TODO(synk): single-buffer them (pl.Buffered(1)) once that
            # pipeline_mode is confirmed supported, to reclaim ~300 KiB VMEM.
            pl.BlockSpec((INPUT_SIZE, HID_PAD), lambda i: (0, 0)),
            pl.BlockSpec((1, HID_PAD), lambda i: (0, 0)),
            pl.BlockSpec((HID_PAD, HID_PAD), lambda i: (0, 0)),
            pl.BlockSpec((1, HID_PAD), lambda i: (0, 0)),
            pl.BlockSpec((HID_PAD, N_PAD), lambda i: (0, 0)),
            pl.BlockSpec((1, N_PAD), lambda i: (0, 0)),
        ],
        out_specs=pl.BlockSpec((tm, N_PAD), lambda i: (i, 0)),
        compiler_params=pltpu.CompilerParams(
            # Row tiles are independent -> shard across TCs on v7x megacore.
            dimension_semantics=("parallel",),
            # Headroom for large TM vs. v5e's 16 MiB default scoped limit,
            # still comfortably inside v7x's 64 MiB physical VMEM.
            vmem_limit_bytes=32 * 1024 * 1024,
        ),
    )(x, w1, b1, w2, b2, w3, b3)

    # Slice the lane-dense padded logits back to the real [B, 2]; return f32
    # to match the PyTorch module's output dtype.
    return out[:, :OUT_SIZE].astype(jnp.float32)


def init_params(key, input_size=INPUT_SIZE):
    """Deterministic init mimicking nn.Linear's U(-1/sqrt(fan_in), 1/sqrt(fan_in))."""
    ks = jax.random.split(key, 6)

    def lin(kw, kb, fan_in, fan_out):
        bound = 1.0 / jnp.sqrt(fan_in)
        w = jax.random.uniform(kw, (fan_in, fan_out), jnp.float32, -bound, bound)
        b = jax.random.uniform(kb, (1, fan_out), jnp.float32, -bound, bound)
        return w, b

    w1, b1 = lin(ks[0], ks[1], input_size, input_size)
    w2, b2 = lin(ks[2], ks[3], input_size, input_size)
    w3, b3 = lin(ks[4], ks[5], input_size, OUT_SIZE)
    return (w1, b1, w2, b2, w3, b3)


def reference(x, params):
    """Pure-JAX f32 reference of the PyTorch forward."""
    w1, b1, w2, b2, w3, b3 = params
    h1 = jnp.maximum(x @ w1 + b1, 0.0)
    h2 = jnp.maximum(h1 @ w2 + b2, 0.0)
    return h2 @ w3 + b3


if __name__ == "__main__":
    key = jax.random.PRNGKey(0)
    k_x, k_p = jax.random.split(key)

    B = 8
    x = jax.random.normal(k_x, (B, INPUT_SIZE), jnp.float32)
    params = init_params(k_p)
    prepared = prepare_params(params)   # one-time weight pad + bf16 cast

    out = distribution_matching_network(x, prepared)
    out = jax.block_until_ready(out)

    ref = reference(x, params)
    assert out.shape == (B, OUT_SIZE), out.shape
    # Tolerance loosened vs. the pure-f32 reference because matmul operands
    # and the final writeback are intentionally bf16 (MXU / bandwidth native);
    # accumulation and biases remain f32.
    assert jnp.allclose(out, ref, atol=4e-2, rtol=4e-2), (
        float(jnp.max(jnp.abs(out - ref)))
    )
    print("KERNEL_OK")
</pallas_src>

<mosaic_0001>
module attributes {stable_mosaic.version = 11 : i64} {
  func.func @dmn_kernel(%arg0: i32, %arg1: memref<8x200xf32, #tpu.memory_space<vmem>>, %arg2: memref<200x256xbf16, #tpu.memory_space<vmem>>, %arg3: memref<1x256xf32, #tpu.memory_space<vmem>>, %arg4: memref<256x256xbf16, #tpu.memory_space<vmem>>, %arg5: memref<1x256xf32, #tpu.memory_space<vmem>>, %arg6: memref<256x128xbf16, #tpu.memory_space<vmem>>, %arg7: memref<1x128xf32, #tpu.memory_space<vmem>>, %arg8: memref<8x128xbf16, #tpu.memory_space<vmem>>) attributes {dimension_semantics = [#tpu.dimension_semantics<parallel>], iteration_bounds = array<i64: 1>, scalar_prefetch = 0 : i64, scratch_operands = 0 : i64, tpu.core_type = #tpu.core_type<tc>, window_params = [{transform_indices = @transform_0, window_bounds = array<i64: 8, 200>}, {pipeline_mode = #tpu.pipeline_mode<synchronous>, transform_indices = @transform_1, window_bounds = array<i64: 200, 256>}, {pipeline_mode = #tpu.pipeline_mode<synchronous>, transform_indices = @transform_2, window_bounds = array<i64: 1, 256>}, {pipeline_mode = #tpu.pipeline_mode<synchronous>, transform_indices = @transform_3, window_bounds = array<i64: 256, 256>}, {pipeline_mode = #tpu.pipeline_mode<synchronous>, transform_indices = @transform_4, window_bounds = array<i64: 1, 256>}, {pipeline_mode = #tpu.pipeline_mode<synchronous>, transform_indices = @transform_5, window_bounds = array<i64: 256, 128>}, {pipeline_mode = #tpu.pipeline_mode<synchronous>, transform_indices = @transform_6, window_bounds = array<i64: 1, 128>}, {transform_indices = @transform_7, window_bounds = array<i64: 8, 128>}]} {
    %c0 = arith.constant 0 : index
    %c0_0 = arith.constant 0 : index
    %0 = vector.load %arg1[%c0, %c0_0] : memref<8x200xf32, #tpu.memory_space<vmem>>, vector<8x200xf32>
    %1 = arith.truncf %0 : vector<8x200xf32> to vector<8x200xbf16>
    %c0_1 = arith.constant 0 : index
    %c0_2 = arith.constant 0 : index
    %2 = vector.load %arg2[%c0_1, %c0_2] : memref<200x256xbf16, #tpu.memory_space<vmem>>, vector<200x256xbf16>
    %cst = arith.constant dense<0.000000e+00> : vector<8x256xf32>
    %3 = tpu.matmul %1, %2, %cst {dimension_numbers = #tpu.dot_dimension_numbers<[1], [0], [0], [1], [0, 0, 1, 1], [], []>} : vector<8x200xbf16>, vector<200x256xbf16>, vector<8x256xf32> -> vector<8x256xf32>
    %c0_3 = arith.constant 0 : index
    %c0_4 = arith.constant 0 : index
    %4 = vector.load %arg3[%c0_3, %c0_4] : memref<1x256xf32, #tpu.memory_space<vmem>>, vector<1x256xf32>
    %5 = vector.broadcast %4 : vector<1x256xf32> to vector<8x256xf32>
    %6 = arith.addf %3, %5 : vector<8x256xf32>
    %cst_5 = arith.constant 0.000000e+00 : f32
    %7 = vector.broadcast %cst_5 : f32 to vector<8x256xf32>
    %8 = arith.maximumf %6, %7 : vector<8x256xf32>
    %9 = arith.truncf %8 : vector<8x256xf32> to vector<8x256xbf16>
    %c0_6 = arith.constant 0 : index
    %c0_7 = arith.constant 0 : index
    %10 = vector.load %arg4[%c0_6, %c0_7] : memref<256x256xbf16, #tpu.memory_space<vmem>>, vector<256x256xbf16>
    %cst_8 = arith.constant dense<0.000000e+00> : vector<8x256xf32>
    %11 = tpu.matmul %9, %10, %cst_8 {dimension_numbers = #tpu.dot_dimension_numbers<[1], [0], [0], [1], [0, 0, 1, 1], [], []>} : vector<8x256xbf16>, vector<256x256xbf16>, vector<8x256xf32> -> vector<8x256xf32>
    %c0_9 = arith.constant 0 : index
    %c0_10 = arith.constant 0 : index
    %12 = vector.load %arg5[%c0_9, %c0_10] : memref<1x256xf32, #tpu.memory_space<vmem>>, vector<1x256xf32>
    %13 = vector.broadcast %12 : vector<1x256xf32> to vector<8x256xf32>
    %14 = arith.addf %11, %13 : vector<8x256xf32>
    %cst_11 = arith.constant 0.000000e+00 : f32
    %15 = vector.broadcast %cst_11 : f32 to vector<8x256xf32>
    %16 = arith.maximumf %14, %15 : vector<8x256xf32>
    %17 = arith.truncf %16 : vector<8x256xf32> to vector<8x256xbf16>
    %c0_12 = arith.constant 0 : index
    %c0_13 = arith.constant 0 : index
    %18 = vector.load %arg6[%c0_12, %c0_13] : memref<256x128xbf16, #tpu.memory_space<vmem>>, vector<256x128xbf16>
    %cst_14 = arith.constant dense<0.000000e+00> : vector<8x128xf32>
    %19 = tpu.matmul %17, %18, %cst_14 {dimension_numbers = #tpu.dot_dimension_numbers<[1], [0], [0], [1], [0, 0, 1, 1], [], []>} : vector<8x256xbf16>, vector<256x128xbf16>, vector<8x128xf32> -> vector<8x128xf32>
    %c0_15 = arith.constant 0 : index
    %c0_16 = arith.constant 0 : index
    %20 = vector.load %arg7[%c0_15, %c0_16] : memref<1x128xf32, #tpu.memory_space<vmem>>, vector<1x128xf32>
    %21 = vector.broadcast %20 : vector<1x128xf32> to vector<8x128xf32>
    %22 = arith.addf %19, %21 : vector<8x128xf32>
    %23 = arith.truncf %22 : vector<8x128xf32> to vector<8x128xbf16>
    %c0_17 = arith.constant 0 : index
    %c0_18 = arith.constant 0 : index
    %24 = vector.load %arg8[%c0_17, %c0_18] : memref<8x128xbf16, #tpu.memory_space<vmem>>, vector<8x128xbf16>
    tpu.vector_store %arg8[%c0_17, %c0_18], %23 {strides = array<i32>} : memref<8x128xbf16, #tpu.memory_space<vmem>>, vector<8x128xbf16>,
    return
  }
  func.func @transform_0(%arg0: i32) -> (i32, i32) {
    %c0_i32 = arith.constant 0 : i32
    %c0_i32_0 = arith.constant 0 : i32
    return %arg0, %c0_i32 : i32, i32
  }
  func.func @transform_1(%arg0: i32) -> (i32, i32) {
    %c0_i32 = arith.constant 0 : i32
    %c0_i32_0 = arith.constant 0 : i32
    %c0_i32_1 = arith.constant 0 : i32
    return %c0_i32, %c0_i32_0 : i32, i32
  }
  func.func @transform_2(%arg0: i32) -> (i32, i32) {
    %c0_i32 = arith.constant 0 : i32
    %c0_i32_0 = arith.constant 0 : i32
    %c0_i32_1 = arith.constant 0 : i32
    return %c0_i32, %c0_i32_0 : i32, i32
  }
  func.func @transform_3(%arg0: i32) -> (i32, i32) {
    %c0_i32 = arith.constant 0 : i32
    %c0_i32_0 = arith.constant 0 : i32
    %c0_i32_1 = arith.constant 0 : i32
    return %c0_i32, %c0_i32_0 : i32, i32
  }
  func.func @transform_4(%arg0: i32) -> (i32, i32) {
    %c0_i32 = arith.constant 0 : i32
    %c0_i32_0 = arith.constant 0 : i32
    %c0_i32_1 = arith.constant 0 : i32
    return %c0_i32, %c0_i32_0 : i32, i32
  }
  func.func @transform_5(%arg0: i32) -> (i32, i32) {
    %c0_i32 = arith.constant 0 : i32
    %c0_i32_0 = arith.constant 0 : i32
    %c0_i32_1 = arith.constant 0 : i32
    return %c0_i32, %c0_i32_0 : i32, i32
  }
  func.func @transform_6(%arg0: i32) -> (i32, i32) {
    %c0_i32 = arith.constant 0 : i32
    %c0_i32_0 = arith.constant 0 : i32
    %c0_i32_1 = arith.constant 0 : i32
    return %c0_i32, %c0_i32_0 : i32, i32
  }
  func.func @transform_7(%arg0: i32) -> (i32, i32) {
    %c0_i32 = arith.constant 0 : i32
    %c0_i32_0 = arith.constant 0 : i32
    return %arg0, %c0_i32 : i32, i32
  }
}

</mosaic_0001>

<llo_original>
// kernel: distribution_matching_network.1
$region0: #{distribution_matching_network.1}
  #allocation0 [shape = 'u32[]', space=smem, size = 0x4, offset = 0x4, fixed_abs, tag = 'smem constant byte address 0x4 - core index']
  #allocation1 [shape = 'u32[72,128]{1,0:T(1,128)}', space=vmem, size = 0x9000, scoped, tag = 'internal scratch']
  %s0 = inlined_call_operand.hbm [shape: f32[8,200], index: 0, kind: input, shape index: {}]
  %s1 = inlined_call_operand.hbm [shape: bf16[200,256], index: 1, kind: input, shape index: {}]
  %s2 = inlined_call_operand.hbm [shape: f32[1,256], index: 2, kind: input, shape index: {}]
  %s3 = inlined_call_operand.hbm [shape: bf16[256,256], index: 3, kind: input, shape index: {}]
  %s4 = inlined_call_operand.vmem [shape: f32[1,256], index: 4, kind: input, shape index: {}]
  %s5 = inlined_call_operand.hbm [shape: bf16[256,128], index: 5, kind: input, shape index: {}]
  %s6 = inlined_call_operand.vmem [shape: f32[1,128], index: 6, kind: input, shape index: {}]
  %s7 = inlined_call_operand.vmem [shape: bf16[8,128], index: 7, kind: output, shape index: {}]
  %s8 = sld [smem:[#allocation0]]
  $region58: #{distribution_matching_network.1} parent=0
    _
  %s10 = ssub.s32 1, %s8
  %s11 = scalar_select 0, %s10, %s8
  $region1: #{distribution_matching_network.1} parent=0
    #allocation2 [shape = 'u8[8192]{0}', space=vmem, size = 0x2000, scoped, tag = 'input window, operand 0, single buffered']
    #allocation3 [shape = 's32[1]{0}', space=sflag, size = 0x4, scoped, tag = 'scoped memory for distribution_matching_network.1']
    #allocation4 [shape = 'u8[102400]{0}', space=vmem, size = 0x19000, scoped, tag = 'input window, operand 1, single buffered']
    #allocation5 [shape = 's32[1]{0}', space=sflag, size = 0x4, scoped, tag = 'scoped memory for distribution_matching_network.1']
    #allocation6 [shape = 'u8[1024]{0}', space=vmem, size = 0x400, scoped, tag = 'input window, operand 2, single buffered']
    #allocation7 [shape = 'u8[131072]{0}', space=vmem, size = 0x20000, scoped, tag = 'input window, operand 3, single buffered']
    #allocation8 [shape = 's32[1]{0}', space=sflag, size = 0x4, scoped, tag = 'scoped memory for distribution_matching_network.1']
    #allocation9 [shape = 'u8[65536]{0}', space=vmem, size = 0x10000, scoped, tag = 'input window, operand 5, single buffered']
    %12 = vsyncpa [#allocation3], 0
    %13 = vsyncpa [#allocation5], 0
    %14 = vsyncpa [#allocation8], 0
    // Predicated region
    $region2: #{distribution_matching_network.1} parent=1 // pred_check
      _
    $region3: #{distribution_matching_network.1} parent=1 // pred_check_branch
      %16 = sbr.rel (0) target = $region5
    $region4: #{distribution_matching_network.1} parent=1 // pred_region
      %18 = vsyncadd [#allocation3], 0
      %s20 = sshll.u32 %s0, 4
      %s21 = int_to_ptr.hbm [resolvable:$true] %s20
      %s22 = sshll.u32 [#allocation2], 4
      %s23 = int_to_ptr.vmem [resolvable:$true] %s22
      %25 = dma.hbm_to_vmem [thread:$0]  %s21, 256, %s23, [#allocation3]
    $region5: #{distribution_matching_network.1} parent=1 // pred_fallthru
      _
    // Predicated region
    $region6: #{distribution_matching_network.1} parent=1 // pred_check
      _
    $region7: #{distribution_matching_network.1} parent=1 // pred_check_branch
      %27 = sbr.rel (0) target = $region9
    $region8: #{distribution_matching_network.1} parent=1 // pred_region
      %29 = vsyncadd [#allocation5], 0
      %s30 = sshll.u32 %s1, 4
      %s31 = int_to_ptr.hbm [resolvable:$true] %s30
      %s32 = sshll.u32 [#allocation4], 4
      %s33 = int_to_ptr.vmem [resolvable:$true] %s32
      %38 = dma.hbm_to_vmem [thread:$0]  %s31, 3200, %s33, [#allocation5], 128, 128, 8
    $region9: #{distribution_matching_network.1} parent=1 // pred_fallthru
      _
    // Predicated region
    $region10: #{distribution_matching_network.1} parent=1 // pred_check
      _
    $region11: #{distribution_matching_network.1} parent=1 // pred_check_branch
      %40 = sbr.rel (0) target = $region13
    $region12: #{distribution_matching_network.1} parent=1 // pred_region
      %42 = vsyncadd [#allocation5], 0
      %s44 = sshll.u32 %s2, 4
      %s45 = int_to_ptr.hbm [resolvable:$true] %s44
      %s46 = sshll.u32 [#allocation6], 4
      %s47 = int_to_ptr.vmem [resolvable:$true] %s46
      %49 = dma.hbm_to_vmem [thread:$0]  %s45, 32, %s47, [#allocation5]
    $region13: #{distribution_matching_network.1} parent=1 // pred_fallthru
      _
    // Predicated region
    $region14: #{distribution_matching_network.1} parent=1 // pred_check
      _
    $region15: #{distribution_matching_network.1} parent=1 // pred_check_branch
      %51 = sbr.rel (0) target = $region17
    $region16: #{distribution_matching_network.1} parent=1 // pred_region
      %53 = vsyncadd [#allocation8], 0
      %s54 = sshll.u32 %s3, 4
      %s55 = int_to_ptr.hbm [resolvable:$true] %s54
      %s56 = sshll.u32 [#allocation7], 4
      %s57 = int_to_ptr.vmem [resolvable:$true] %s56
      %62 = dma.hbm_to_vmem [thread:$0]  %s55, 4096, %s57, [#allocation8], 128, 128, 8
    $region17: #{distribution_matching_network.1} parent=1 // pred_fallthru
      _
    // Predicated region
    $region18: #{distribution_matching_network.1} parent=1 // pred_check
      _
    $region19: #{distribution_matching_network.1} parent=1 // pred_check_branch
      %64 = sbr.rel (0) target = $region21
    $region20: #{distribution_matching_network.1} parent=1 // pred_region
      _
    $region21: #{distribution_matching_network.1} parent=1 // pred_fallthru
      _
    // Predicated region
    $region22: #{distribution_matching_network.1} parent=1 // pred_check
      _
    $region23: #{distribution_matching_network.1} parent=1 // pred_check_branch
      %66 = sbr.rel (0) target = $region25
    $region24: #{distribution_matching_network.1} parent=1 // pred_region
      %68 = vsyncadd [#allocation8], 0
      %s69 = sshll.u32 %s5, 4
      %s70 = int_to_ptr.hbm [resolvable:$true] %s69
      %s71 = sshll.u32 [#allocation9], 4
      %s72 = int_to_ptr.vmem [resolvable:$true] %s71
      %77 = dma.hbm_to_vmem [thread:$0]  %s70, 2048, %s72, [#allocation8], 64, 64, 4
    $region25: #{distribution_matching_network.1} parent=1 // pred_fallthru
      _
    // Predicated region
    $region26: #{distribution_matching_network.1} parent=1 // pred_check
      _
    $region27: #{distribution_matching_network.1} parent=1 // pred_check_branch
      %79 = sbr.rel (0) target = $region29
    $region28: #{distribution_matching_network.1} parent=1 // pred_region
      _
    $region29: #{distribution_matching_network.1} parent=1 // pred_fallthru
      _
    // Predicated region
    $region30: #{distribution_matching_network.1} parent=1 // pred_check
      _
    $region31: #{distribution_matching_network.1} parent=1 // pred_check_branch
      %81 = sbr.rel (0) target = $region33
    $region32: #{distribution_matching_network.1} parent=1 // pred_region
      %83 = dma.done [#allocation3], 256
    $region33: #{distribution_matching_network.1} parent=1 // pred_fallthru
      _
    // Predicated region
    $region34: #{distribution_matching_network.1} parent=1 // pred_check
      _
    $region35: #{distribution_matching_network.1} parent=1 // pred_check_branch
      %85 = sbr.rel (0) target = $region37
    $region36: #{distribution_matching_network.1} parent=1 // pred_region
      %87 = dma.done [#allocation5], 3200
    $region37: #{distribution_matching_network.1} parent=1 // pred_fallthru
      _
    // Predicated region
    $region38: #{distribution_matching_network.1} parent=1 // pred_check
      _
    $region39: #{distribution_matching_network.1} parent=1 // pred_check_branch
      %89 = sbr.rel (0) target = $region41
    $region40: #{distribution_matching_network.1} parent=1 // pred_region
      %91 = dma.done [#allocation5], 32
    $region41: #{distribution_matching_network.1} parent=1 // pred_fallthru
      _
    // Predicated region
    $region42: #{distribution_matching_network.1} parent=1 // pred_check
      _
    $region43: #{distribution_matching_network.1} parent=1 // pred_check_branch
      %93 = sbr.rel (0) target = $region45
    $region44: #{distribution_matching_network.1} parent=1 // pred_region
      %95 = dma.done [#allocation8], 4096
    $region45: #{distribution_matching_network.1} parent=1 // pred_fallthru
      _
    // Predicated region
    $region46: #{distribution_matching_network.1} parent=1 // pred_check
      _
    $region47: #{distribution_matching_network.1} parent=1 // pred_check_branch
      %97 = sbr.rel (0) target = $region49
    $region48: #{distribution_matching_network.1} parent=1 // pred_region
      %99 = dma.done [#allocation8], 2048
    $region49: #{distribution_matching_network.1} parent=1 // pred_fallthru
      _
    %v101 = vld [vmem:[#allocation2] sm:$0xff]
    %v102 = vld [vmem:[#allocation2 + $0x8] sm:$0xff]
    %v103 = vpack.c.bf16 %v101, %v101
    %v104 = vpack.c.bf16 %v102, %v102
    %v105 = vld [vmem:[#allocation4] sm:$0xff]
    %v106 = vld [vmem:[#allocation4 + $0x8] sm:$0xff]
    %v107 = vld [vmem:[#allocation4 + $0x10] sm:$0xff]
    %v108 = vld [vmem:[#allocation4 + $0x18] sm:$0xff]
    %v109 = vld [vmem:[#allocation4 + $0x20] sm:$0xff]
    %v110 = vld [vmem:[#allocation4 + $0x28] sm:$0xff]
    %v111 = vld [vmem:[#allocation4 + $0x30] sm:$0xff]
    %v112 = vld [vmem:[#allocation4 + $0x38] sm:$0xff]
    %v113 = vld [vmem:[#allocation4 + $0x40] sm:$0xff]
    %v114 = vld [vmem:[#allocation4 + $0x48] sm:$0xff]
    %v115 = vld [vmem:[#allocation4 + $0x50] sm:$0xff]
    %v116 = vld [vmem:[#allocation4 + $0x58] sm:$0xff]
    %v117 = vld [vmem:[#allocation4 + $0x60] sm:$0xff]
    %v118 = vld [vmem:[#allocation4 + $0x68] sm:$0xff]
    %v119 = vld [vmem:[#allocation4 + $0x70] sm:$0xff]
    %v120 = vld [vmem:[#allocation4 + $0x78] sm:$0xff]
    %v121 = vld [vmem:[#allocation4 + $0x80] sm:$0xff]
    %v122 = vld [vmem:[#allocation4 + $0x88] sm:$0xff]
    %v123 = vld [vmem:[#allocation4 + $0x90] sm:$0xff]
    %v124 = vld [vmem:[#allocation4 + $0x98] sm:$0xff]
    %v125 = vld [vmem:[#allocation4 + $0xa0] sm:$0xff]
    %v126 = vld [vmem:[#allocation4 + $0xa8] sm:$0xff]
    %v127 = vld [vmem:[#allocation4 + $0xb0] sm:$0xff]
    %v128 = vld [vmem:[#allocation4 + $0xb8] sm:$0xff]
    %v129 = vld [vmem:[#allocation4 + $0xc0] sm:$0xff]
    %v130 = vld [vmem:[#allocation6] sm:$0x3]
    %v132 = vperm.slane %v130, 0
    %v133 = vperm.slane %v130, 1
    %v161 = vunpack.c.l.b16 %v105
    %v162 = vunpack.c.h.b16 %v105
    %v163 = vunpack.c.l.b16 %v106
    %v164 = vunpack.c.h.b16 %v106
    %v165 = vunpack.c.l.b16 %v107
    %v166 = vunpack.c.h.b16 %v107
    %v167 = vunpack.c.l.b16 %v108
    %v168 = vunpack.c.h.b16 %v108
    %v169 = vunpack.c.l.b16 %v109
    %v170 = vunpack.c.h.b16 %v109
    %v171 = vunpack.c.l.b16 %v110
    %v172 = vunpack.c.h.b16 %v110
    %v173 = vunpack.c.l.b16 %v111
    %v174 = vunpack.c.h.b16 %v111
    %v175 = vunpack.c.l.b16 %v112
    %v176 = vunpack.c.h.b16 %v112
    %v177 = vunpack.c.l.b16 %v113
    %v178 = vunpack.c.h.b16 %v113
    %v179 = vunpack.c.l.b16 %v114
    %v180 = vunpack.c.h.b16 %v114
    %v181 = vunpack.c.l.b16 %v115
    %v182 = vunpack.c.h.b16 %v115
    %v183 = vunpack.c.l.b16 %v116
    %v184 = vunpack.c.h.b16 %v116
    %v185 = vunpack.c.l.b16 %v117
    %v186 = vunpack.c.h.b16 %v117
    %v187 = vunpack.c.l.b16 %v118
    %v188 = vunpack.c.h.b16 %v118
    %v189 = vunpack.c.l.b16 %v119
    %v190 = vunpack.c.h.b16 %v119
    %v191 = vunpack.c.l.b16 %v120
    %v192 = vunpack.c.h.b16 %v120
    %v193 = vunpack.c.l.b16 %v121
    %v194 = vunpack.c.h.b16 %v121
    %v195 = vunpack.c.l.b16 %v122
    %v196 = vunpack.c.h.b16 %v122
    %v197 = vunpack.c.l.b16 %v123
    %v198 = vunpack.c.h.b16 %v123
    %v199 = vunpack.c.l.b16 %v124
    %v200 = vunpack.c.h.b16 %v124
    %v201 = vunpack.c.l.b16 %v125
    %v202 = vunpack.c.h.b16 %v125
    %v203 = vunpack.c.l.b16 %v126
    %v204 = vunpack.c.h.b16 %v126
    %v205 = vunpack.c.l.b16 %v127
    %v206 = vunpack.c.h.b16 %v127
    %v207 = vunpack.c.l.b16 %v128
    %v208 = vunpack.c.h.b16 %v128
    %v209 = vunpack.c.l.b16 %v129
    %v210 = vunpack.c.h.b16 %v129
    %v211 = vpack.c.b16 %v163, %v161
    %v212 = vpack.c.b16 %v164, %v162
    %v213 = vpack.c.b16 %v167, %v165
    %v214 = vpack.c.b16 %v168, %v166
    %v215 = vpack.c.b16 %v171, %v169
    %v216 = vpack.c.b16 %v172, %v170
    %v217 = vpack.c.b16 %v175, %v173
    %v218 = vpack.c.b16 %v176, %v174
    %v219 = vpack.c.b16 %v179, %v177
    %v220 = vpack.c.b16 %v180, %v178
    %v221 = vpack.c.b16 %v183, %v181
    %v222 = vpack.c.b16 %v184, %v182
    %v223 = vpack.c.b16 %v187, %v185
    %v224 = vpack.c.b16 %v188, %v186
    %v225 = vpack.c.b16 %v191, %v189
    %v226 = vpack.c.b16 %v192, %v190
    %v227 = vpack.c.b16 %v195, %v193
    %v228 = vpack.c.b16 %v196, %v194
    %v229 = vpack.c.b16 %v199, %v197
    %v230 = vpack.c.b16 %v200, %v198
    %v231 = vpack.c.b16 %v203, %v201
    %v232 = vpack.c.b16 %v204, %v202
    %v233 = vpack.c.b16 %v207, %v205
    %v234 = vpack.c.b16 %v208, %v206
    %v235 = vpack.c.b16 %v209, %v209
    %v236 = vpack.c.b16 %v210, %v210
    %vm261 = vcmask 588800
    %v263 = vsel %vm261, %v104, 0
    %vm265 = vcmask 1043456
    %v267 = vsel %vm265, %v235, 0
    %v270 = vsel %vm265, %v236, 0
    %272 = vmatpush.bf16.msra.mxu0 %v225
    %273 = vmatpush.bf16.msra.mxu0 %v223
    %274 = vmatpush.bf16.msra.mxu0 %v221
    %275 = vmatpush.bf16.msra.mxu0 %v219
    %276 = vmatpush.bf16.msra.mxu0 %v217
    %277 = vmatpush.bf16.msra.mxu0 %v215
    %278 = vmatpush.bf16.msra.mxu0 %v213
    %279 = vmatpush.bf16.msra.mxu0 %v211
    %280 = vmatmul.bf16.gmra.mxu0 %v103
    %v281 = vpop.f32.mrf.mxu0
    %v282 = vadd.f32 %v132, %v281
    %v283 = vpop.f32.mrf.mxu0
    %284 = vdwg.mxu0
    %285 = vmatpush.bf16.msra.mxu0 0
    %286 = vmatpush.bf16.msra.mxu0 0
    %287 = vmatpush.bf16.msra.mxu0 0
    %288 = vmatpush.bf16.msra.mxu0 %v267
    %289 = vmatpush.bf16.msra.mxu0 %v233
    %290 = vmatpush.bf16.msra.mxu0 %v231
    %291 = vmatpush.bf16.msra.mxu0 %v229
    %292 = vmatpush.bf16.msra.mxu0 %v227
    %293 = vmatmul.bf16.gmra.mxu0 %v263
    %v294 = vpop.f32.mrf.mxu0
    %v295 = vadd.f32 %v282, %v294
    %v296 = vpop.f32.mrf.mxu0
    %297 = vdwg.mxu0
    %298 = vmatpush.bf16.msra.mxu0 %v226
    %299 = vmatpush.bf16.msra.mxu0 %v224
    %300 = vmatpush.bf16.msra.mxu0 %v222
    %301 = vmatpush.bf16.msra.mxu0 %v220
    %302 = vmatpush.bf16.msra.mxu0 %v218
    %303 = vmatpush.bf16.msra.mxu0 %v216
    %304 = vmatpush.bf16.msra.mxu0 %v214
    %305 = vmatpush.bf16.msra.mxu0 %v212
    %306 = vmatmul.bf16.gmra.mxu0 %v103
    %v307 = vpop.f32.mrf.mxu0
    %v308 = vadd.f32 %v133, %v307
    %v309 = vpop.f32.mrf.mxu0
    %310 = vdwg.mxu0
    %311 = vmatpush.bf16.msra.mxu0 0
    %312 = vmatpush.bf16.msra.mxu0 0
    %313 = vmatpush.bf16.msra.mxu0 0
    %314 = vmatpush.bf16.msra.mxu0 %v270
    %315 = vmatpush.bf16.msra.mxu0 %v234
    %316 = vmatpush.bf16.msra.mxu0 %v232
    %317 = vmatpush.bf16.msra.mxu0 %v230
    %318 = vmatpush.bf16.msra.mxu0 %v228
    %319 = vmatmul.bf16.gmra.mxu0 %v263
    %v320 = vpop.f32.mrf.mxu0
    %v321 = vadd.f32 %v308, %v320
    %v322 = vpop.f32.mrf.mxu0
    %323 = vdwg.mxu0
    %v324 = vmax.f32 %v295, 0.0
    %v325 = vmax.f32 %v321, 0.0
    %v326 = vpack.c.bf16 %v324, %v324
    %v327 = vpack.c.bf16 %v325, %v325
    %v328 = vld [vmem:[#allocation7] sm:$0xff]
    %v329 = vld [vmem:[#allocation7 + $0x8] sm:$0xff]
    %v330 = vld [vmem:[#allocation7 + $0x10] sm:$0xff]
    %v331 = vld [vmem:[#allocation7 + $0x18] sm:$0xff]
    %v332 = vld [vmem:[#allocation7 + $0x20] sm:$0xff]
    %v333 = vld [vmem:[#allocation7 + $0x28] sm:$0xff]
    %v334 = vld [vmem:[#allocation7 + $0x30] sm:$0xff]
    %v335 = vld [vmem:[#allocation7 + $0x38] sm:$0xff]
    %v336 = vld [vmem:[#allocation7 + $0x40] sm:$0xff]
    %v337 = vld [vmem:[#allocation7 + $0x48] sm:$0xff]
    %v338 = vld [vmem:[#allocation7 + $0x50] sm:$0xff]
    %v339 = vld [vmem:[#allocation7 + $0x58] sm:$0xff]
    %v340 = vld [vmem:[#allocation7 + $0x60] sm:$0xff]
    %v341 = vld [vmem:[#allocation7 + $0x68] sm:$0xff]
    %v342 = vld [vmem:[#allocation7 + $0x70] sm:$0xff]
    %v343 = vld [vmem:[#allocation7 + $0x78] sm:$0xff]
    %v344 = vld [vmem:[#allocation7 + $0x80] sm:$0xff]
    %v345 = vld [vmem:[#allocation7 + $0x88] sm:$0xff]
    %v346 = vld [vmem:[#allocation7 + $0x90] sm:$0xff]
    %v347 = vld [vmem:[#allocation7 + $0x98] sm:$0xff]
    %v348 = vld [vmem:[#allocation7 + $0xa0] sm:$0xff]
    %v349 = vld [vmem:[#allocation7 + $0xa8] sm:$0xff]
    %v350 = vld [vmem:[#allocation7 + $0xb0] sm:$0xff]
    %v351 = vld [vmem:[#allocation7 + $0xb8] sm:$0xff]
    %v352 = vld [vmem:[#allocation7 + $0xc0] sm:$0xff]
    %v353 = vld [vmem:[#allocation7 + $0xc8] sm:$0xff]
    %v354 = vld [vmem:[#allocation7 + $0xd0] sm:$0xff]
    %v355 = vld [vmem:[#allocation7 + $0xd8] sm:$0xff]
    %v356 = vld [vmem:[#allocation7 + $0xe0] sm:$0xff]
    %v357 = vld [vmem:[#allocation7 + $0xe8] sm:$0xff]
    %v358 = vld [vmem:[#allocation7 + $0xf0] sm:$0xff]
    %v359 = vld [vmem:[#allocation7 + $0xf8] sm:$0xff]
    %v360 = vld [vmem:[%s4] sm:$0x3]
    %v362 = vperm.slane %v360, 0
    %v363 = vperm.slane %v360, 1
    %v398 = vunpack.c.l.b16 %v328
    %v399 = vunpack.c.h.b16 %v328
    %v400 = vunpack.c.l.b16 %v329
    %v401 = vunpack.c.h.b16 %v329
    %v402 = vunpack.c.l.b16 %v330
    %v403 = vunpack.c.h.b16 %v330
    %v404 = vunpack.c.l.b16 %v331
    %v405 = vunpack.c.h.b16 %v331
    %v406 = vunpack.c.l.b16 %v332
    %v407 = vunpack.c.h.b16 %v332
    %v408 = vunpack.c.l.b16 %v333
    %v409 = vunpack.c.h.b16 %v333
    %v410 = vunpack.c.l.b16 %v334
    %v411 = vunpack.c.h.b16 %v334
    %v412 = vunpack.c.l.b16 %v335
    %v413 = vunpack.c.h.b16 %v335
    %v414 = vunpack.c.l.b16 %v336
    %v415 = vunpack.c.h.b16 %v336
    %v416 = vunpack.c.l.b16 %v337
    %v417 = vunpack.c.h.b16 %v337
    %v418 = vunpack.c.l.b16 %v338
    %v419 = vunpack.c.h.b16 %v338
    %v420 = vunpack.c.l.b16 %v339
    %v421 = vunpack.c.h.b16 %v339
    %v422 = vunpack.c.l.b16 %v340
    %v423 = vunpack.c.h.b16 %v340
    %v424 = vunpack.c.l.b16 %v341
    %v425 = vunpack.c.h.b16 %v341
    %v426 = vunpack.c.l.b16 %v342
    %v427 = vunpack.c.h.b16 %v342
    %v428 = vunpack.c.l.b16 %v343
    %v429 = vunpack.c.h.b16 %v343
    %v430 = vunpack.c.l.b16 %v344
    %v431 = vunpack.c.h.b16 %v344
    %v432 = vunpack.c.l.b16 %v345
    %v433 = vunpack.c.h.b16 %v345
    %v434 = vunpack.c.l.b16 %v346
    %v435 = vunpack.c.h.b16 %v346
    %v436 = vunpack.c.l.b16 %v347
    %v437 = vunpack.c.h.b16 %v347
    %v438 = vunpack.c.l.b16 %v348
    %v439 = vunpack.c.h.b16 %v348
    %v440 = vunpack.c.l.b16 %v349
    %v441 = vunpack.c.h.b16 %v349
    %v442 = vunpack.c.l.b16 %v350
    %v443 = vunpack.c.h.b16 %v350
    %v444 = vunpack.c.l.b16 %v351
    %v445 = vunpack.c.h.b16 %v351
    %v446 = vunpack.c.l.b16 %v352
    %v447 = vunpack.c.h.b16 %v352
    %v448 = vunpack.c.l.b16 %v353
    %v449 = vunpack.c.h.b16 %v353
    %v450 = vunpack.c.l.b16 %v354
    %v451 = vunpack.c.h.b16 %v354
    %v452 = vunpack.c.l.b16 %v355
    %v453 = vunpack.c.h.b16 %v355
    %v454 = vunpack.c.l.b16 %v356
    %v455 = vunpack.c.h.b16 %v356
    %v456 = vunpack.c.l.b16 %v357
    %v457 = vunpack.c.h.b16 %v357
    %v458 = vunpack.c.l.b16 %v358
    %v459 = vunpack.c.h.b16 %v358
    %v460 = vunpack.c.l.b16 %v359
    %v461 = vunpack.c.h.b16 %v359
    %v462 = vpack.c.b16 %v400, %v398
    %v463 = vpack.c.b16 %v401, %v399
    %v464 = vpack.c.b16 %v404, %v402
    %v465 = vpack.c.b16 %v405, %v403
    %v466 = vpack.c.b16 %v408, %v406
    %v467 = vpack.c.b16 %v409, %v407
    %v468 = vpack.c.b16 %v412, %v410
    %v469 = vpack.c.b16 %v413, %v411
    %v470 = vpack.c.b16 %v416, %v414
    %v471 = vpack.c.b16 %v417, %v415
    %v472 = vpack.c.b16 %v420, %v418
    %v473 = vpack.c.b16 %v421, %v419
    %v474 = vpack.c.b16 %v424, %v422
    %v475 = vpack.c.b16 %v425, %v423
    %v476 = vpack.c.b16 %v428, %v426
    %v477 = vpack.c.b16 %v429, %v427
    %v478 = vpack.c.b16 %v432, %v430
    %v479 = vpack.c.b16 %v433, %v431
    %v480 = vpack.c.b16 %v436, %v434
    %v481 = vpack.c.b16 %v437, %v435
    %v482 = vpack.c.b16 %v440, %v438
    %v483 = vpack.c.b16 %v441, %v439
    %v484 = vpack.c.b16 %v444, %v442
    %v485 = vpack.c.b16 %v445, %v443
    %v486 = vpack.c.b16 %v448, %v446
    %v487 = vpack.c.b16 %v449, %v447
    %v488 = vpack.c.b16 %v452, %v450
    %v489 = vpack.c.b16 %v453, %v451
    %v490 = vpack.c.b16 %v456, %v454
    %v491 = vpack.c.b16 %v457, %v455
    %v492 = vpack.c.b16 %v460, %v458
    %v493 = vpack.c.b16 %v461, %v459
    %526 = vmatpush.bf16.msra.mxu0 %v476
    %527 = vmatpush.bf16.msra.mxu0 %v474
    %528 = vmatpush.bf16.msra.mxu0 %v472
    %529 = vmatpush.bf16.msra.mxu0 %v470
    %530 = vmatpush.bf16.msra.mxu0 %v468
    %531 = vmatpush.bf16.msra.mxu0 %v466
    %532 = vmatpush.bf16.msra.mxu0 %v464
    %533 = vmatpush.bf16.msra.mxu0 %v462
    %534 = vmatmul.bf16.gmra.mxu0 %v326
    %v535 = vpop.f32.mrf.mxu0
    %v536 = vadd.f32 %v362, %v535
    %v537 = vpop.f32.mrf.mxu0
    %538 = vdwg.mxu0
    %539 = vmatpush.bf16.msra.mxu0 %v492
    %540 = vmatpush.bf16.msra.mxu0 %v490
    %541 = vmatpush.bf16.msra.mxu0 %v488
    %542 = vmatpush.bf16.msra.mxu0 %v486
    %543 = vmatpush.bf16.msra.mxu0 %v484
    %544 = vmatpush.bf16.msra.mxu0 %v482
    %545 = vmatpush.bf16.msra.mxu0 %v480
    %546 = vmatpush.bf16.msra.mxu0 %v478
    %547 = vmatmul.bf16.gmra.mxu0 %v327
    %v548 = vpop.f32.mrf.mxu0
    %v549 = vadd.f32 %v536, %v548
    %v550 = vpop.f32.mrf.mxu0
    %551 = vdwg.mxu0
    %552 = vmatpush.bf16.msra.mxu0 %v477
    %553 = vmatpush.bf16.msra.mxu0 %v475
    %554 = vmatpush.bf16.msra.mxu0 %v473
    %555 = vmatpush.bf16.msra.mxu0 %v471
    %556 = vmatpush.bf16.msra.mxu0 %v469
    %557 = vmatpush.bf16.msra.mxu0 %v467
    %558 = vmatpush.bf16.msra.mxu0 %v465
    %559 = vmatpush.bf16.msra.mxu0 %v463
    %560 = vmatmul.bf16.gmra.mxu0 %v326
    %v561 = vpop.f32.mrf.mxu0
    %v562 = vadd.f32 %v363, %v561
    %v563 = vpop.f32.mrf.mxu0
    %564 = vdwg.mxu0
    %565 = vmatpush.bf16.msra.mxu0 %v493
    %566 = vmatpush.bf16.msra.mxu0 %v491
    %567 = vmatpush.bf16.msra.mxu0 %v489
    %568 = vmatpush.bf16.msra.mxu0 %v487
    %569 = vmatpush.bf16.msra.mxu0 %v485
    %570 = vmatpush.bf16.msra.mxu0 %v483
    %571 = vmatpush.bf16.msra.mxu0 %v481
    %572 = vmatpush.bf16.msra.mxu0 %v479
    %573 = vmatmul.bf16.gmra.mxu0 %v327
    %v574 = vpop.f32.mrf.mxu0
    %v575 = vadd.f32 %v562, %v574
    %v576 = vpop.f32.mrf.mxu0
    %577 = vdwg.mxu0
    %v578 = vmax.f32 %v549, 0.0
    %v579 = vmax.f32 %v575, 0.0
    %v580 = vpack.c.bf16 %v578, %v578
    %v581 = vpack.c.bf16 %v579, %v579
    %v582 = vld [vmem:[#allocation9] sm:$0xf]
    %v583 = vld [vmem:[#allocation9 + $0x4] sm:$0xf]
    %v584 = vld [vmem:[#allocation9 + $0x8] sm:$0xf]
    %v585 = vld [vmem:[#allocation9 + $0xc] sm:$0xf]
    %v586 = vld [vmem:[#allocation9 + $0x10] sm:$0xf]
    %v587 = vld [vmem:[#allocation9 + $0x14] sm:$0xf]
    %v588 = vld [vmem:[#allocation9 + $0x18] sm:$0xf]
    %v589 = vld [vmem:[#allocation9 + $0x1c] sm:$0xf]
    %v590 = vld [vmem:[#allocation9 + $0x20] sm:$0xf]
    %v591 = vld [vmem:[#allocation9 + $0x24] sm:$0xf]
    %v592 = vld [vmem:[#allocation9 + $0x28] sm:$0xf]
    %v593 = vld [vmem:[#allocation9 + $0x2c] sm:$0xf]
    %v594 = vld [vmem:[#allocation9 + $0x30] sm:$0xf]
    %v595 = vld [vmem:[#allocation9 + $0x34] sm:$0xf]
    %v596 = vld [vmem:[#allocation9 + $0x38] sm:$0xf]
    %v597 = vld [vmem:[#allocation9 + $0x3c] sm:$0xf]
    %v598 = vld [vmem:[#allocation9 + $0x40] sm:$0xf]
    %v599 = vld [vmem:[#allocation9 + $0x44] sm:$0xf]
    %v600 = vld [vmem:[#allocation9 + $0x48] sm:$0xf]
    %v601 = vld [vmem:[#allocation9 + $0x4c] sm:$0xf]
    %v602 = vld [vmem:[#allocation9 + $0x50] sm:$0xf]
    %v603 = vld [vmem:[#allocation9 + $0x54] sm:$0xf]
    %v604 = vld [vmem:[#allocation9 + $0x58] sm:$0xf]
    %v605 = vld [vmem:[#allocation9 + $0x5c] sm:$0xf]
    %v606 = vld [vmem:[#allocation9 + $0x60] sm:$0xf]
    %v607 = vld [vmem:[#allocation9 + $0x64] sm:$0xf]
    %v608 = vld [vmem:[#allocation9 + $0x68] sm:$0xf]
    %v609 = vld [vmem:[#allocation9 + $0x6c] sm:$0xf]
    %v610 = vld [vmem:[#allocation9 + $0x70] sm:$0xf]
    %v611 = vld [vmem:[#allocation9 + $0x74] sm:$0xf]
    %v612 = vld [vmem:[#allocation9 + $0x78] sm:$0xf]
    %v613 = vld [vmem:[#allocation9 + $0x7c] sm:$0xf]
    %v614 = vld [vmem:[%s6] sm:$0x1]
    %v616 = vperm.slane %v614, 0
    %v650 = vunpack.c.l.b16 %v582
    %v651 = vunpack.c.l.b16 %v583
    %v652 = vunpack.c.l.b16 %v584
    %v653 = vunpack.c.l.b16 %v585
    %v654 = vunpack.c.l.b16 %v586
    %v655 = vunpack.c.l.b16 %v587
    %v656 = vunpack.c.l.b16 %v588
    %v657 = vunpack.c.l.b16 %v589
    %v658 = vunpack.c.l.b16 %v590
    %v659 = vunpack.c.l.b16 %v591
    %v660 = vunpack.c.l.b16 %v592
    %v661 = vunpack.c.l.b16 %v593
    %v662 = vunpack.c.l.b16 %v594
    %v663 = vunpack.c.l.b16 %v595
    %v664 = vunpack.c.l.b16 %v596
    %v665 = vunpack.c.l.b16 %v597
    %v666 = vunpack.c.l.b16 %v598
    %v667 = vunpack.c.l.b16 %v599
    %v668 = vunpack.c.l.b16 %v600
    %v669 = vunpack.c.l.b16 %v601
    %v670 = vunpack.c.l.b16 %v602
    %v671 = vunpack.c.l.b16 %v603
    %v672 = vunpack.c.l.b16 %v604
    %v673 = vunpack.c.l.b16 %v605
    %v674 = vunpack.c.l.b16 %v606
    %v675 = vunpack.c.l.b16 %v607
    %v676 = vunpack.c.l.b16 %v608
    %v677 = vunpack.c.l.b16 %v609
    %v678 = vunpack.c.l.b16 %v610
    %v679 = vunpack.c.l.b16 %v611
    %v680 = vunpack.c.l.b16 %v612
    %v681 = vunpack.c.l.b16 %v613
    %v682 = vpack.c.b16 %v651, %v650
    %v683 = vpack.c.b16 %v653, %v652
    %v684 = vpack.c.b16 %v655, %v654
    %v685 = vpack.c.b16 %v657, %v656
    %v686 = vpack.c.b16 %v659, %v658
    %v687 = vpack.c.b16 %v661, %v660
    %v688 = vpack.c.b16 %v663, %v662
    %v689 = vpack.c.b16 %v665, %v664
    %v690 = vpack.c.b16 %v667, %v666
    %v691 = vpack.c.b16 %v669, %v668
    %v692 = vpack.c.b16 %v671, %v670
    %v693 = vpack.c.b16 %v673, %v672
    %v694 = vpack.c.b16 %v675, %v674
    %v695 = vpack.c.b16 %v677, %v676
    %v696 = vpack.c.b16 %v679, %v678
    %v697 = vpack.c.b16 %v681, %v680
    %714 = vmatpush.bf16.msra.mxu0 %v689
    %715 = vmatpush.bf16.msra.mxu0 %v688
    %716 = vmatpush.bf16.msra.mxu0 %v687
    %717 = vmatpush.bf16.msra.mxu0 %v686
    %718 = vmatpush.bf16.msra.mxu0 %v685
    %719 = vmatpush.bf16.msra.mxu0 %v684
    %720 = vmatpush.bf16.msra.mxu0 %v683
    %721 = vmatpush.bf16.msra.mxu0 %v682
    %722 = vmatmul.bf16.gmra.mxu0 %v580
    %v723 = vpop.f32.mrf.mxu0
    %v724 = vadd.f32 %v616, %v723
    %v725 = vpop.f32.mrf.mxu0
    %726 = vdwg.mxu0
    %727 = vmatpush.bf16.msra.mxu0 %v697
    %728 = vmatpush.bf16.msra.mxu0 %v696
    %729 = vmatpush.bf16.msra.mxu0 %v695
    %730 = vmatpush.bf16.msra.mxu0 %v694
    %731 = vmatpush.bf16.msra.mxu0 %v693
    %732 = vmatpush.bf16.msra.mxu0 %v692
    %733 = vmatpush.bf16.msra.mxu0 %v691
    %734 = vmatpush.bf16.msra.mxu0 %v690
    %735 = vmatmul.bf16.gmra.mxu0 %v581
    %v736 = vpop.f32.mrf.mxu0
    %v737 = vadd.f32 %v724, %v736
    %v738 = vpop.f32.mrf.mxu0
    %739 = vdwg.mxu0
    %v740 = vpack.c.bf16 %v737, %v737
    %741 = vst [vmem:[%s7] sm:$0xf] %v740
    // Predicated region
    $region50: #{distribution_matching_network.1} parent=1 // pred_check
      _
    $region51: #{distribution_matching_network.1} parent=1 // pred_check_branch
      %743 = sbr.rel (0) target = $region53
    $region52: #{distribution_matching_network.1} parent=1 // pred_region
      _
    $region53: #{distribution_matching_network.1} parent=1 // pred_fallthru
      _
    // Predicated region
    $region54: #{distribution_matching_network.1} parent=1 // pred_check
      _
    $region55: #{distribution_matching_network.1} parent=1 // pred_check_branch
      %745 = sbr.rel (0) target = $region57
    $region56: #{distribution_matching_network.1} parent=1 // pred_region
      _
    $region57: #{distribution_matching_network.1} parent=1 // pred_fallthru
      _
    %746 = vsyncpa [#allocation3], 1
    %747 = vsyncpa [#allocation5], 1
    %748 = vsyncpa [#allocation8], 1

</llo_original>
